<compile_context>
chip_gen: v7x
topology: tpu7x:2x2x1
jax: 0.10.0
libtpu: 0.0.40
codegen_flags: <defaults>
</compile_context>

<pallas_src>
import functools

import jax
import jax.numpy as jnp
from jax.experimental import pallas as pl
from jax.experimental.pallas import tpu as pltpu


def _rope_attn_kernel(x_ref, wq_ref, bq_ref, wkv_ref, bkv_ref,
                      cos_ref, sin_ref, wproj_ref, bproj_ref, o_ref,
                      *, num_heads, head_dim, q_tile):
    d = head_dim
    half = d // 2
    dim = num_heads * d

    q_start = pl.multiple_of(pl.program_id(1) * q_tile, q_tile)

    x_full = x_ref[0]                                    # (n, dim)  bf16
    x_q = x_ref[0, pl.ds(q_start, q_tile), :]            # (TQ, dim) bf16

    # Fused projections over all heads (wide MXU matmuls, f32 accumulation).
    # q only for this query tile; scale 1/sqrt(d) is folded into wq/bq.
    q = jnp.dot(x_q, wq_ref[...],
                preferred_element_type=jnp.float32) + bq_ref[...]         # (TQ, dim)
    kv = jnp.dot(x_full, wkv_ref[...],
                 preferred_element_type=jnp.float32) + bkv_ref[...]       # (n, 2*dim)
    k = kv[:, :dim]
    v = kv[:, dim:]

    cos_q = cos_ref[pl.ds(q_start, q_tile), :]           # (TQ, d) f32
    sin_q = sin_ref[pl.ds(q_start, q_tile), :]
    cos_k = cos_ref[...]                                  # (n, d)
    sin_k = sin_ref[...]

    parts = []
    for h in range(num_heads):                            # short unrolled head loop
        sl = slice(h * d, (h + 1) * d)
        q_h = q[:, sl]
        k_h = k[:, sl]
        # Split-half RoPE: one XLU roll per slab; rotated-term sign is folded
        # into the sin table; CLS row is the identity rotation (cos=1, sin=0).
        q_h = q_h * cos_q + pltpu.roll(q_h, shift=half, axis=1) * sin_q
        k_h = k_h * cos_k + pltpu.roll(k_h, shift=half, axis=1) * sin_k

        # logits: bf16 MXU inputs, f32 accumulation.  attn_drop(p=0) == id.
        s = jax.lax.dot_general(
            q_h.astype(jnp.bfloat16), k_h.astype(jnp.bfloat16),
            (((1,), (1,)), ((), ())),
            preferred_element_type=jnp.float32)                            # (TQ, n)
        m = jnp.max(s, axis=-1, keepdims=True)
        e = jnp.exp(s - m)                                                 # f32 exp (v5e-safe)
        denom = jnp.sum(e, axis=-1, keepdims=True)
        o_h = jnp.dot(e.astype(jnp.bfloat16), v[:, sl].astype(jnp.bfloat16),
                      preferred_element_type=jnp.float32)                  # (TQ, d)
        # deferred softmax normalization on the small (TQ, d) result (EUP).
        parts.append(o_h * pl.reciprocal(denom, approx=False))

    # Single full-width output projection (K = dim) replaces H accumulator
    # read-modify-write passes.  proj_drop(p=0) == identity.
    o_slab = jnp.concatenate(parts, axis=-1).astype(jnp.bfloat16)          # (TQ, dim)
    out = jnp.dot(o_slab, wproj_ref[...],
                  preferred_element_type=jnp.float32) + bproj_ref[...]
    o_ref[0] = out.astype(o_ref.dtype)


def rope_attention(x, wqkv, bqkv, wproj, bproj, cos_fc, sin_fc, num_heads,
                   q_tile=None):
    """x: (b, n, dim); wqkv: (3*dim, dim); cos_fc/sin_fc: (n-1, head_dim//2)."""
    b, n, dim = x.shape
    assert dim % num_heads == 0
    d = dim // num_heads
    assert d % 2 == 0, "RoPE requires an even head_dim"
    half = d // 2
    scale = d ** -0.5
    out_dtype = x.dtype

    # Default: no query tiling (K/V projected exactly once).  Query tiling is
    # only worth it for very long sequences; it re-projects K/V per tile.
    if q_tile is None:
        q_tile = n
    assert n % q_tile == 0 and (q_tile % 8 == 0 or q_tile == n)
    n_qt = n // q_tile

    # Per-head split-half (evens|odds) permutation of q/k weight rows; q and k
    # get the same permutation so q.k^T is unchanged; v / proj keep the
    # original feature order.  1/sqrt(d) folded into wq/bq.
    perm = jnp.concatenate([jnp.arange(0, d, 2), jnp.arange(1, d, 2)])

    wq_rows = wqkv[:dim].reshape(num_heads, d, dim)[:, perm, :] * scale     # (H,d,dim)
    wk_rows = wqkv[dim:2 * dim].reshape(num_heads, d, dim)[:, perm, :]
    wv = wqkv[2 * dim:]                                                     # (dim,dim)
    bq = (bqkv[:dim].reshape(num_heads, d)[:, perm] * scale).reshape(dim)
    bk = bqkv[dim:2 * dim].reshape(num_heads, d)[:, perm].reshape(dim)
    bv = bqkv[2 * dim:]

    wq_t = wq_rows.reshape(dim, dim).T.astype(jnp.bfloat16)                 # (dim, dim)
    wkv_t = jnp.concatenate([wk_rows.reshape(dim, dim).T, wv.T],
                            axis=-1).astype(jnp.bfloat16)                   # (dim, 2*dim)
    wproj_t = wproj.T.astype(jnp.bfloat16)                                  # (dim, dim)

    bq_2d = bq.reshape(1, dim).astype(jnp.float32)
    bkv_2d = jnp.concatenate([bk, bv]).reshape(1, 2 * dim).astype(jnp.float32)
    bproj_2d = bproj.reshape(1, dim).astype(jnp.float32)

    # RoPE tables in split-half layout, (n, head_dim).  Row 0 is the identity
    # rotation (CLS token is not rotated); sign of the rotated term folded
    # into the sin table.  All heads share the same table (matches PyTorch).
    cos_half = jnp.concatenate([jnp.ones((1, half), jnp.float32),
                                cos_fc.astype(jnp.float32)], axis=0)        # (n, half)
    sin_half = jnp.concatenate([jnp.zeros((1, half), jnp.float32),
                                sin_fc.astype(jnp.float32)], axis=0)
    cos_d = jnp.concatenate([cos_half, cos_half], axis=-1)                  # (n, d)
    sin_d = jnp.concatenate([-sin_half, sin_half], axis=-1)

    x_bf = x.astype(jnp.bfloat16)   # bf16 MXU inputs, halves x HBM traffic

    # TODO(synk): the PyTorch forward also computes tmp = v_proj(x) and stores
    # debug state (save_v / save_attn / register_hook); these do not affect
    # the returned tensor and are omitted.  attn_drop/proj_drop assumed p=0.

    kernel = functools.partial(_rope_attn_kernel, num_heads=num_heads,
                               head_dim=d, q_tile=q_tile)
    return pl.pallas_call(
        kernel,
        out_shape=jax.ShapeDtypeStruct((b, n, dim), out_dtype),
        grid=(b, n_qt),
        in_specs=[
            pl.BlockSpec((1, n, dim), lambda i, t: (i, 0, 0)),       # x (full seq)
            pl.BlockSpec((dim, dim), lambda i, t: (0, 0)),           # wq  (fused, resident)
            pl.BlockSpec((1, dim), lambda i, t: (0, 0)),             # bq
            pl.BlockSpec((dim, 2 * dim), lambda i, t: (0, 0)),       # wkv (fused, resident)
            pl.BlockSpec((1, 2 * dim), lambda i, t: (0, 0)),         # bkv
            pl.BlockSpec((n, d), lambda i, t: (0, 0)),               # cos table
            pl.BlockSpec((n, d), lambda i, t: (0, 0)),               # sin table
            pl.BlockSpec((dim, dim), lambda i, t: (0, 0)),           # wproj (resident)
            pl.BlockSpec((1, dim), lambda i, t: (0, 0)),             # proj bias
        ],
        out_specs=pl.BlockSpec((1, q_tile, dim), lambda i, t: (i, t, 0)),
        compiler_params=pltpu.CompilerParams(
            dimension_semantics=("parallel", "parallel"),
            vmem_limit_bytes=48 * 1024 * 1024),
    )(x_bf, wq_t, bq_2d, wkv_t, bkv_2d, cos_d, sin_d, wproj_t, bproj_2d)


def ref_forward(x, wqkv, bqkv, wproj, bproj, cos_fc, sin_fc, num_heads):
    """Pure-JAX f32 reference that mirrors the PyTorch forward exactly."""
    b, n, dim = x.shape
    d = dim // num_heads
    scale = d ** -0.5
    qkv = x @ wqkv.T + bqkv
    qkv = qkv.reshape(b, n, 3, num_heads, d).transpose(2, 0, 3, 1, 4)
    q, k, v = qkv[0], qkv[1], qkv[2]                     # (b, h, n, d)

    def rope(t):                                         # interleaved complex rotation
        tr = t.reshape(b, num_heads, n - 1, d // 2, 2)
        te, to = tr[..., 0], tr[..., 1]
        oe = te * cos_fc - to * sin_fc
        oo = te * sin_fc + to * cos_fc
        return jnp.stack([oe, oo], axis=-1).reshape(b, num_heads, n - 1, d)

    q = q.at[:, :, 1:].set(rope(q[:, :, 1:]))
    k = k.at[:, :, 1:].set(rope(k[:, :, 1:]))
    dots = jnp.einsum('bhid,bhjd->bhij', q, k) * scale
    attn = jax.nn.softmax(dots, axis=-1)
    out = jnp.einsum('bhij,bhjd->bhid', attn, v)
    out = out.transpose(0, 2, 1, 3).reshape(b, n, dim)
    return out @ wproj.T + bproj


if __name__ == "__main__":
    # Small but representative shapes: dim = 128 keeps the output lane-dense;
    # head_dim = 64 matches ViT-B; q_tile=8 exercises the query-tile grid axis.
    b, n, dim, num_heads = 2, 16, 128, 2
    head_dim = dim // num_heads            # 64

    key = jax.random.PRNGKey(0)
    ks = jax.random.split(key, 5)
    x = jax.random.normal(ks[0], (b, n, dim), jnp.float32)
    wqkv = jax.random.normal(ks[1], (3 * dim, dim), jnp.float32) * 0.05
    bqkv = jax.random.normal(ks[2], (3 * dim,), jnp.float32) * 0.02
    wproj = jax.random.normal(ks[3], (dim, dim), jnp.float32) * 0.05
    bproj = jax.random.normal(ks[4], (dim,), jnp.float32) * 0.02

    # freqs_cis equivalent (positions 1..n-1, CLS excluded): (n-1, head_dim//2)
    inv_freq = 1.0 / (10000.0 ** (jnp.arange(0, head_dim, 2, dtype=jnp.float32)
                                  / head_dim))
    t = jnp.arange(n - 1, dtype=jnp.float32)
    ang = jnp.outer(t, inv_freq)
    cos_fc, sin_fc = jnp.cos(ang), jnp.sin(ang)

    out = rope_attention(x, wqkv, bqkv, wproj, bproj, cos_fc, sin_fc,
                         num_heads, q_tile=8)
    out = jax.block_until_ready(out)

    ref = ref_forward(x, wqkv, bqkv, wproj, bproj, cos_fc, sin_fc, num_heads)
    err = float(jnp.max(jnp.abs(out - ref)))
    assert out.shape == (b, n, dim)
    # bf16 MXU inputs -> looser tolerance than pure f32.
    assert jnp.allclose(out, ref, atol=2e-2, rtol=2e-2), f"max abs err {err}"
    print("KERNEL_OK")
</pallas_src>

<mosaic_0001>
module attributes {stable_mosaic.version = 11 : i64} {
  func.func @_rope_attn_kernel(%arg0: i32, %arg1: i32, %arg2: memref<1x16x128xbf16, #tpu.memory_space<vmem>>, %arg3: memref<128x128xbf16, #tpu.memory_space<vmem>>, %arg4: memref<1x128xf32, #tpu.memory_space<vmem>>, %arg5: memref<128x256xbf16, #tpu.memory_space<vmem>>, %arg6: memref<1x256xf32, #tpu.memory_space<vmem>>, %arg7: memref<16x64xf32, #tpu.memory_space<vmem>>, %arg8: memref<16x64xf32, #tpu.memory_space<vmem>>, %arg9: memref<128x128xbf16, #tpu.memory_space<vmem>>, %arg10: memref<1x128xf32, #tpu.memory_space<vmem>>, %arg11: memref<1x8x128xf32, #tpu.memory_space<vmem>>) attributes {dimension_semantics = [#tpu.dimension_semantics<parallel>, #tpu.dimension_semantics<parallel>], iteration_bounds = array<i64: 2, 2>, scalar_prefetch = 0 : i64, scratch_operands = 0 : i64, tpu.core_type = #tpu.core_type<tc>, window_params = [{transform_indices = @transform_0, window_bounds = array<i64: 1, 16, 128>}, {pipeline_mode = #tpu.pipeline_mode<synchronous>, transform_indices = @transform_1, window_bounds = array<i64: 128, 128>}, {pipeline_mode = #tpu.pipeline_mode<synchronous>, transform_indices = @transform_2, window_bounds = array<i64: 1, 128>}, {pipeline_mode = #tpu.pipeline_mode<synchronous>, transform_indices = @transform_3, window_bounds = array<i64: 128, 256>}, {pipeline_mode = #tpu.pipeline_mode<synchronous>, transform_indices = @transform_4, window_bounds = array<i64: 1, 256>}, {pipeline_mode = #tpu.pipeline_mode<synchronous>, transform_indices = @transform_5, window_bounds = array<i64: 16, 64>}, {pipeline_mode = #tpu.pipeline_mode<synchronous>, transform_indices = @transform_6, window_bounds = array<i64: 16, 64>}, {pipeline_mode = #tpu.pipeline_mode<synchronous>, transform_indices = @transform_7, window_bounds = array<i64: 128, 128>}, {pipeline_mode = #tpu.pipeline_mode<synchronous>, transform_indices = @transform_8, window_bounds = array<i64: 1, 128>}, {transform_indices = @transform_9, window_bounds = array<i64: 1, 8, 128>}]} {
    %c8_i32 = arith.constant 8 : i32
    %0 = arith.muli %arg1, %c8_i32 : i32
    %1 = tpu.assume_multiple %0, 8 : i32
    %c0 = arith.constant 0 : index
    %c0_0 = arith.constant 0 : index
    %c0_1 = arith.constant 0 : index
    %2 = vector.load %arg2[%c0, %c0_0, %c0_1] : memref<1x16x128xbf16, #tpu.memory_space<vmem>>, vector<1x16x128xbf16>
    %3 = vector.shape_cast %2 : vector<1x16x128xbf16> to vector<16x128xbf16>
    %c0_2 = arith.constant 0 : index
    %4 = arith.index_cast %1 : i32 to index
    %c0_3 = arith.constant 0 : index
    %5 = vector.load %arg2[%c0_2, %4, %c0_3] : memref<1x16x128xbf16, #tpu.memory_space<vmem>>, vector<1x8x128xbf16>
    %6 = vector.shape_cast %5 : vector<1x8x128xbf16> to vector<8x128xbf16>
    %c0_4 = arith.constant 0 : index
    %c0_5 = arith.constant 0 : index
    %7 = vector.load %arg3[%c0_4, %c0_5] : memref<128x128xbf16, #tpu.memory_space<vmem>>, vector<128x128xbf16>
    %cst = arith.constant dense<0.000000e+00> : vector<8x128xf32>
    %8 = tpu.matmul %6, %7, %cst {dimension_numbers = #tpu.dot_dimension_numbers<[1], [0], [0], [1], [0, 0, 1, 1], [], []>} : vector<8x128xbf16>, vector<128x128xbf16>, vector<8x128xf32> -> vector<8x128xf32>
    %c0_6 = arith.constant 0 : index
    %c0_7 = arith.constant 0 : index
    %9 = vector.load %arg4[%c0_6, %c0_7] : memref<1x128xf32, #tpu.memory_space<vmem>>, vector<1x128xf32>
    %10 = vector.broadcast %9 : vector<1x128xf32> to vector<8x128xf32>
    %11 = arith.addf %8, %10 : vector<8x128xf32>
    %c0_8 = arith.constant 0 : index
    %c0_9 = arith.constant 0 : index
    %12 = vector.load %arg5[%c0_8, %c0_9] : memref<128x256xbf16, #tpu.memory_space<vmem>>, vector<128x256xbf16>
    %cst_10 = arith.constant dense<0.000000e+00> : vector<16x256xf32>
    %13 = tpu.matmul %3, %12, %cst_10 {dimension_numbers = #tpu.dot_dimension_numbers<[1], [0], [0], [1], [0, 0, 1, 1], [], []>} : vector<16x128xbf16>, vector<128x256xbf16>, vector<16x256xf32> -> vector<16x256xf32>
    %c0_11 = arith.constant 0 : index
    %c0_12 = arith.constant 0 : index
    %14 = vector.load %arg6[%c0_11, %c0_12] : memref<1x256xf32, #tpu.memory_space<vmem>>, vector<1x256xf32>
    %15 = vector.broadcast %14 : vector<1x256xf32> to vector<16x256xf32>
    %16 = arith.addf %13, %15 : vector<16x256xf32>
    %17 = vector.extract_strided_slice %16 {offsets = [0, 0], sizes = [16, 128], strides = [1, 1]} : vector<16x256xf32> to vector<16x128xf32>
    %18 = vector.extract_strided_slice %16 {offsets = [0, 128], sizes = [16, 128], strides = [1, 1]} : vector<16x256xf32> to vector<16x128xf32>
    %19 = arith.index_cast %1 : i32 to index
    %c0_13 = arith.constant 0 : index
    %20 = vector.load %arg7[%19, %c0_13] : memref<16x64xf32, #tpu.memory_space<vmem>>, vector<8x64xf32>
    %21 = arith.index_cast %1 : i32 to index
    %c0_14 = arith.constant 0 : index
    %22 = vector.load %arg8[%21, %c0_14] : memref<16x64xf32, #tpu.memory_space<vmem>>, vector<8x64xf32>
    %c0_15 = arith.constant 0 : index
    %c0_16 = arith.constant 0 : index
    %23 = vector.load %arg7[%c0_15, %c0_16] : memref<16x64xf32, #tpu.memory_space<vmem>>, vector<16x64xf32>
    %c0_17 = arith.constant 0 : index
    %c0_18 = arith.constant 0 : index
    %24 = vector.load %arg8[%c0_17, %c0_18] : memref<16x64xf32, #tpu.memory_space<vmem>>, vector<16x64xf32>
    %25 = vector.extract_strided_slice %11 {offsets = [0, 0], sizes = [8, 64], strides = [1, 1]} : vector<8x128xf32> to vector<8x64xf32>
    %26 = vector.extract_strided_slice %17 {offsets = [0, 0], sizes = [16, 64], strides = [1, 1]} : vector<16x128xf32> to vector<16x64xf32>
    %27 = arith.mulf %25, %20 : vector<8x64xf32>
    %c32_i32 = arith.constant 32 : i32
    %28 = tpu.dynamic_rotate %25 by %c32_i32 dim 1 : vector<8x64xf32>, i32 -> vector<8x64xf32>
    %29 = arith.mulf %28, %22 : vector<8x64xf32>
    %30 = arith.addf %27, %29 : vector<8x64xf32>
    %31 = arith.mulf %26, %23 : vector<16x64xf32>
    %c32_i32_19 = arith.constant 32 : i32
    %32 = tpu.dynamic_rotate %26 by %c32_i32_19 dim 1 : vector<16x64xf32>, i32 -> vector<16x64xf32>
    %33 = arith.mulf %32, %24 : vector<16x64xf32>
    %34 = arith.addf %31, %33 : vector<16x64xf32>
    %35 = arith.truncf %30 : vector<8x64xf32> to vector<8x64xbf16>
    %36 = arith.truncf %34 : vector<16x64xf32> to vector<16x64xbf16>
    %cst_20 = arith.constant dense<0.000000e+00> : vector<8x16xf32>
    %37 = tpu.matmul %35, %36, %cst_20 {dimension_numbers = #tpu.dot_dimension_numbers<[1], [1], [0], [0], [0, 0, 1, 0], [], []>} : vector<8x64xbf16>, vector<16x64xbf16>, vector<8x16xf32> -> vector<8x16xf32>
    %cst_21 = arith.constant dense<0xFF800000> : vector<8xf32>
    %38 = vector.multi_reduction <maximumf>, %37, %cst_21 [1] : vector<8x16xf32> to vector<8xf32>
    %39 = vector.shape_cast %38 : vector<8xf32> to vector<8x1xf32>
    %40 = vector.broadcast %39 : vector<8x1xf32> to vector<8x16xf32>
    %41 = arith.subf %37, %40 : vector<8x16xf32>
    %42 = math.exp %41 : vector<8x16xf32>
    %cst_22 = arith.constant dense<0.000000e+00> : vector<8xf32>
    %43 = vector.multi_reduction <add>, %42, %cst_22 [1] : vector<8x16xf32> to vector<8xf32>
    %44 = vector.shape_cast %43 : vector<8xf32> to vector<8x1xf32>
    %45 = arith.truncf %42 : vector<8x16xf32> to vector<8x16xbf16>
    %46 = vector.extract_strided_slice %18 {offsets = [0, 0], sizes = [16, 64], strides = [1, 1]} : vector<16x128xf32> to vector<16x64xf32>
    %47 = arith.truncf %46 : vector<16x64xf32> to vector<16x64xbf16>
    %cst_23 = arith.constant dense<0.000000e+00> : vector<8x64xf32>
    %48 = tpu.matmul %45, %47, %cst_23 {dimension_numbers = #tpu.dot_dimension_numbers<[1], [0], [0], [1], [0, 0, 1, 1], [], []>} : vector<8x16xbf16>, vector<16x64xbf16>, vector<8x64xf32> -> vector<8x64xf32>
    %49 = tpu.reciprocal %44 : vector<8x1xf32> -> vector<8x1xf32>
    %50 = vector.broadcast %49 : vector<8x1xf32> to vector<8x64xf32>
    %51 = arith.mulf %48, %50 : vector<8x64xf32>
    %52 = vector.extract_strided_slice %11 {offsets = [0, 64], sizes = [8, 64], strides = [1, 1]} : vector<8x128xf32> to vector<8x64xf32>
    %53 = vector.extract_strided_slice %17 {offsets = [0, 64], sizes = [16, 64], strides = [1, 1]} : vector<16x128xf32> to vector<16x64xf32>
    %54 = arith.mulf %52, %20 : vector<8x64xf32>
    %c32_i32_24 = arith.constant 32 : i32
    %55 = tpu.dynamic_rotate %52 by %c32_i32_24 dim 1 : vector<8x64xf32>, i32 -> vector<8x64xf32>
    %56 = arith.mulf %55, %22 : vector<8x64xf32>
    %57 = arith.addf %54, %56 : vector<8x64xf32>
    %58 = arith.mulf %53, %23 : vector<16x64xf32>
    %c32_i32_25 = arith.constant 32 : i32
    %59 = tpu.dynamic_rotate %53 by %c32_i32_25 dim 1 : vector<16x64xf32>, i32 -> vector<16x64xf32>
    %60 = arith.mulf %59, %24 : vector<16x64xf32>
    %61 = arith.addf %58, %60 : vector<16x64xf32>
    %62 = arith.truncf %57 : vector<8x64xf32> to vector<8x64xbf16>
    %63 = arith.truncf %61 : vector<16x64xf32> to vector<16x64xbf16>
    %cst_26 = arith.constant dense<0.000000e+00> : vector<8x16xf32>
    %64 = tpu.matmul %62, %63, %cst_26 {dimension_numbers = #tpu.dot_dimension_numbers<[1], [1], [0], [0], [0, 0, 1, 0], [], []>} : vector<8x64xbf16>, vector<16x64xbf16>, vector<8x16xf32> -> vector<8x16xf32>
    %cst_27 = arith.constant dense<0xFF800000> : vector<8xf32>
    %65 = vector.multi_reduction <maximumf>, %64, %cst_27 [1] : vector<8x16xf32> to vector<8xf32>
    %66 = vector.shape_cast %65 : vector<8xf32> to vector<8x1xf32>
    %67 = vector.broadcast %66 : vector<8x1xf32> to vector<8x16xf32>
    %68 = arith.subf %64, %67 : vector<8x16xf32>
    %69 = math.exp %68 : vector<8x16xf32>
    %cst_28 = arith.constant dense<0.000000e+00> : vector<8xf32>
    %70 = vector.multi_reduction <add>, %69, %cst_28 [1] : vector<8x16xf32> to vector<8xf32>
    %71 = vector.shape_cast %70 : vector<8xf32> to vector<8x1xf32>
    %72 = arith.truncf %69 : vector<8x16xf32> to vector<8x16xbf16>
    %73 = vector.extract_strided_slice %18 {offsets = [0, 64], sizes = [16, 64], strides = [1, 1]} : vector<16x128xf32> to vector<16x64xf32>
    %74 = arith.truncf %73 : vector<16x64xf32> to vector<16x64xbf16>
    %cst_29 = arith.constant dense<0.000000e+00> : vector<8x64xf32>
    %75 = tpu.matmul %72, %74, %cst_29 {dimension_numbers = #tpu.dot_dimension_numbers<[1], [0], [0], [1], [0, 0, 1, 1], [], []>} : vector<8x16xbf16>, vector<16x64xbf16>, vector<8x64xf32> -> vector<8x64xf32>
    %76 = tpu.reciprocal %71 : vector<8x1xf32> -> vector<8x1xf32>
    %77 = vector.broadcast %76 : vector<8x1xf32> to vector<8x64xf32>
    %78 = arith.mulf %75, %77 : vector<8x64xf32>
    %79 = tpu.concatenate %51, %78 in 1 : vector<8x64xf32>, vector<8x64xf32> -> vector<8x128xf32>
    %80 = arith.truncf %79 : vector<8x128xf32> to vector<8x128xbf16>
    %c0_30 = arith.constant 0 : index
    %c0_31 = arith.constant 0 : index
    %81 = vector.load %arg9[%c0_30, %c0_31] : memref<128x128xbf16, #tpu.memory_space<vmem>>, vector<128x128xbf16>
    %cst_32 = arith.constant dense<0.000000e+00> : vector<8x128xf32>
    %82 = tpu.matmul %80, %81, %cst_32 {dimension_numbers = #tpu.dot_dimension_numbers<[1], [0], [0], [1], [0, 0, 1, 1], [], []>} : vector<8x128xbf16>, vector<128x128xbf16>, vector<8x128xf32> -> vector<8x128xf32>
    %c0_33 = arith.constant 0 : index
    %c0_34 = arith.constant 0 : index
    %83 = vector.load %arg10[%c0_33, %c0_34] : memref<1x128xf32, #tpu.memory_space<vmem>>, vector<1x128xf32>
    %84 = vector.broadcast %83 : vector<1x128xf32> to vector<8x128xf32>
    %85 = arith.addf %82, %84 : vector<8x128xf32>
    %c0_35 = arith.constant 0 : index
    %c0_36 = arith.constant 0 : index
    %c0_37 = arith.constant 0 : index
    %86 = vector.load %arg11[%c0_35, %c0_36, %c0_37] : memref<1x8x128xf32, #tpu.memory_space<vmem>>, vector<1x8x128xf32>
    %87 = vector.shape_cast %86 : vector<1x8x128xf32> to vector<8x128xf32>
    %88 = vector.shape_cast %85 : vector<8x128xf32> to vector<1x8x128xf32>
    tpu.vector_store %arg11[%c0_35, %c0_36, %c0_37], %88 {strides = array<i32>} : memref<1x8x128xf32, #tpu.memory_space<vmem>>, vector<1x8x128xf32>,
    return
  }
  func.func @transform_0(%arg0: i32, %arg1: i32) -> (i32, i32, i32) {
    %c0_i32 = arith.constant 0 : i32
    %c0_i32_0 = arith.constant 0 : i32
    %c0_i32_1 = arith.constant 0 : i32
    return %arg0, %c0_i32, %c0_i32_0 : i32, i32, i32
  }
  func.func @transform_1(%arg0: i32, %arg1: i32) -> (i32, i32) {
    %c0_i32 = arith.constant 0 : i32
    %c0_i32_0 = arith.constant 0 : i32
    %c0_i32_1 = arith.constant 0 : i32
    return %c0_i32, %c0_i32_0 : i32, i32
  }
  func.func @transform_2(%arg0: i32, %arg1: i32) -> (i32, i32) {
    %c0_i32 = arith.constant 0 : i32
    %c0_i32_0 = arith.constant 0 : i32
    %c0_i32_1 = arith.constant 0 : i32
    return %c0_i32, %c0_i32_0 : i32, i32
  }
  func.func @transform_3(%arg0: i32, %arg1: i32) -> (i32, i32) {
    %c0_i32 = arith.constant 0 : i32
    %c0_i32_0 = arith.constant 0 : i32
    %c0_i32_1 = arith.constant 0 : i32
    return %c0_i32, %c0_i32_0 : i32, i32
  }
  func.func @transform_4(%arg0: i32, %arg1: i32) -> (i32, i32) {
    %c0_i32 = arith.constant 0 : i32
    %c0_i32_0 = arith.constant 0 : i32
    %c0_i32_1 = arith.constant 0 : i32
    return %c0_i32, %c0_i32_0 : i32, i32
  }
  func.func @transform_5(%arg0: i32, %arg1: i32) -> (i32, i32) {
    %c0_i32 = arith.constant 0 : i32
    %c0_i32_0 = arith.constant 0 : i32
    %c0_i32_1 = arith.constant 0 : i32
    return %c0_i32, %c0_i32_0 : i32, i32
  }
  func.func @transform_6(%arg0: i32, %arg1: i32) -> (i32, i32) {
    %c0_i32 = arith.constant 0 : i32
    %c0_i32_0 = arith.constant 0 : i32
    %c0_i32_1 = arith.constant 0 : i32
    return %c0_i32, %c0_i32_0 : i32, i32
  }
  func.func @transform_7(%arg0: i32, %arg1: i32) -> (i32, i32) {
    %c0_i32 = arith.constant 0 : i32
    %c0_i32_0 = arith.constant 0 : i32
    %c0_i32_1 = arith.constant 0 : i32
    return %c0_i32, %c0_i32_0 : i32, i32
  }
  func.func @transform_8(%arg0: i32, %arg1: i32) -> (i32, i32) {
    %c0_i32 = arith.constant 0 : i32
    %c0_i32_0 = arith.constant 0 : i32
    %c0_i32_1 = arith.constant 0 : i32
    return %c0_i32, %c0_i32_0 : i32, i32
  }
  func.func @transform_9(%arg0: i32, %arg1: i32) -> (i32, i32, i32) {
    %c0_i32 = arith.constant 0 : i32
    %c0_i32_0 = arith.constant 0 : i32
    return %arg0, %arg1, %c0_i32 : i32, i32, i32
  }
}

</mosaic_0001>

<llo_original>
// kernel: tpu_custom_call.1
$region0: #{tpu_custom_call.1}
  #allocation0 [shape = 'u32[]', space=smem, size = 0x4, offset = 0x4, fixed_abs, tag = 'smem constant byte address 0x4 - core index']
  #allocation1 [shape = 'u32[144,128]{1,0:T(1,128)}', space=vmem, size = 0x12000, scoped, tag = 'internal scratch']
  %s0 = inlined_call_operand.hbm [shape: bf16[2,16,128], index: 0, kind: input, shape index: {}]
  %s1 = inlined_call_operand.hbm [shape: bf16[128,128], index: 1, kind: input, shape index: {}]
  %s2 = inlined_call_operand.hbm [shape: f32[1,128], index: 2, kind: input, shape index: {}]
  %s3 = inlined_call_operand.hbm [shape: bf16[128,256], index: 3, kind: input, shape index: {}]
  %s4 = inlined_call_operand.vmem [shape: f32[1,256], index: 4, kind: input, shape index: {}]
  %s5 = inlined_call_operand.vmem [shape: f32[16,64], index: 5, kind: input, shape index: {}]
  %s6 = inlined_call_operand.hbm [shape: f32[16,64], index: 6, kind: input, shape index: {}]
  %s7 = inlined_call_operand.hbm [shape: bf16[128,128], index: 7, kind: input, shape index: {}]
  %s8 = inlined_call_operand.vmem [shape: f32[1,128], index: 8, kind: input, shape index: {}]
  %s9 = inlined_call_operand.hbm [shape: f32[2,16,128], index: 9, kind: output, shape index: {}]
  %s10 = sld [smem:[#allocation0]]
  $region93: #{tpu_custom_call.1} parent=0
    _
  %s12 = ssub.s32 1, %s10
  %s13 = scalar_select 0, %s12, %s10
  $region1: #{tpu_custom_call.1} parent=0
    #allocation2 [shape = 'u8[8192]{0}', space=vmem, size = 0x2000, scoped, tag = 'input window, operand 0']
    #allocation3 [shape = 's32[2]{0}', space=sflag, size = 0x8, scoped, tag = 'scoped memory for tpu_custom_call.1']
    #allocation4 [shape = 's32[2]{0}', space=sflag, size = 0x8, scoped, tag = 'scoped memory for tpu_custom_call.1']
    #allocation5 [shape = 'u8[32768]{0}', space=vmem, size = 0x8000, scoped, tag = 'input window, operand 1, single buffered']
    #allocation6 [shape = 's32[1]{0}', space=sflag, size = 0x4, scoped, tag = 'scoped memory for tpu_custom_call.1']
    #allocation7 [shape = 'u8[512]{0}', space=vmem, size = 0x400, scoped, tag = 'input window, operand 2, single buffered']
    #allocation8 [shape = 'u8[65536]{0}', space=vmem, size = 0x10000, scoped, tag = 'input window, operand 3, single buffered']
    #allocation9 [shape = 's32[1]{0}', space=sflag, size = 0x4, scoped, tag = 'scoped memory for tpu_custom_call.1']
    #allocation10 [shape = 'u8[8192]{0}', space=vmem, size = 0x2000, scoped, tag = 'input window, operand 6, single buffered']
    #allocation11 [shape = 'u8[32768]{0}', space=vmem, size = 0x8000, scoped, tag = 'input window, operand 7, single buffered']
    #allocation12 [shape = 's32[1]{0}', space=sflag, size = 0x4, scoped, tag = 'scoped memory for tpu_custom_call.1']
    #allocation13 [shape = 'u8[8192]{0}', space=vmem, size = 0x2000, scoped, tag = 'output window, operand 0']
    %14 = vsyncpa [#allocation3], 0
    %s15 = scalar_lea.sflag [#allocation3], 1
    %16 = vsyncpa %s15, 0
    %17 = vsyncpa [#allocation6], 0
    %18 = vsyncpa [#allocation9], 0
    %19 = vsyncpa [#allocation12], 0
    %20 = vsyncpa [#allocation4], 0
    %s21 = scalar_lea.sflag [#allocation4], 1
    %22 = vsyncpa %s21, 0
    loop: start=0, step=1, limit=6
    $region2: #{tpu_custom_call.1} parent=1 // loop_pre_header
      _
    $region3: #{tpu_custom_call.1} parent=1 // loop_header
      %s24 = sphi 0, %s28
      %p25 = scmp.ge.s32.totalorder %s24, 6
      %s31 = sphi 0, %s43
      %s32 = sphi 0, %s39
      %s33 = sphi 0, %s31
      %s34 = sphi 0, %s32
      %s35 = sphi 0, %s33
      %s36 = sphi 0, %s34
      %s46 = sphi 0, %s48
      %s49 = sphi 0, %s46
      %s50 = sphi 0, %s49
      %s66 = sphi 0, %s50
      %s70 = sphi 0, %s70
      %s72 = sphi 0, %s70
      %s73 = sphi 0, %s72
      %s87 = sphi 0, %s73
      %s91 = sphi 0, %s91
      %s93 = sphi 0, %s91
      %s94 = sphi 0, %s93
      %s108 = sphi 0, %s94
      %s112 = sphi 0, %s112
      %s114 = sphi 0, %s112
      %s115 = sphi 0, %s114
      %s129 = sphi 0, %s115
      %s133 = sphi 0, %s133
      %s135 = sphi 0, %s133
      %s136 = sphi 0, %s135
      %s150 = sphi 0, %s136
      %s154 = sphi 0, %s154
      %s156 = sphi 0, %s154
      %s157 = sphi 0, %s156
      %s171 = sphi 0, %s157
      %s175 = sphi 0, %s175
      %s177 = sphi 0, %s175
      %s178 = sphi 0, %s177
      %s192 = sphi 0, %s178
      %s196 = sphi 0, %s196
      %s198 = sphi 0, %s196
      %s199 = sphi 0, %s198
      %s213 = sphi 0, %s199
      %s217 = sphi 0, %s217
      %s219 = sphi 0, %s217
      %s220 = sphi 0, %s219
      %s234 = sphi 0, %s220
      %s242 = sphi 0, %s244
      %s245 = sphi 0, %s242
      %s246 = sphi 0, %s245
      %s262 = sphi 0, %s246
    $region4: #{tpu_custom_call.1} parent=1 // loop_header_branch
      %27 = sbr.rel (%p25) target = $region8
    $region5: #{tpu_custom_call.1} parent=1 // loop_body
      %s29 = ssub.s32 %s24, 1
      %s30 = ssub.s32 %s24, 2
      %s37 = sadd.s32 1, %s32
      %p38 = scmp.ge.s32.totalorder %s37, 2
      %s39 = scalar_select %p38, 0, %s37
      %s40 = sadd.s32 1, %s31
      %s41 = scalar_select %p38, %s40, %s31
      %p42 = scmp.ge.s32.totalorder %s41, 2
      %s43 = scalar_select %p42, 0, %s41
      %s44 = ssub.s32 %s31, %s43
      %p45 = scmp.eq.s32.totalorder %s44, 0
      %s47 = sadd.s32 %s46, 1
      %s48 = scalar_select %p45, %s46, %s47
      %p51 = pneg %p45
      %p52 = scmp.eq.s32.totalorder %s24, 3
      %p53 = por %p51, %p52
      %p54 = scmp.ne.s32.totalorder %s46, %s49
      %p55 = scmp.eq.s32.totalorder %s24, 0
      %p56 = por %p54, %p55
      %p57 = scmp.ne.s32.totalorder %s46, %s49
      %p58 = scmp.eq.s32.totalorder %s29, 3
      %p59 = por %p57, %p58
      %p60 = scmp.ne.s32.totalorder %s49, %s50
      %p61 = scmp.eq.s32.totalorder %s29, 0
      %p62 = por %p60, %p61
      %p63 = scmp.ne.s32.totalorder %s49, %s50
      %p64 = scmp.eq.s32.totalorder %s30, 3
      %p65 = por %p63, %p64
      %p67 = scmp.ne.s32.totalorder %s50, %s66
      %p68 = scmp.eq.s32.totalorder %s30, 0
      %p69 = por %p67, %p68
      %s71 = sadd.s32 %s70, 1
      %p74 = scmp.eq.s32.totalorder %s24, 3
      %p75 = scmp.ne.s32.totalorder %s70, %s72
      %p76 = scmp.eq.s32.totalorder %s24, 0
      %p77 = por %p75, %p76
      %p78 = scmp.ne.s32.totalorder %s70, %s72
      %p79 = scmp.eq.s32.totalorder %s29, 3
      %p80 = por %p78, %p79
      %p81 = scmp.ne.s32.totalorder %s72, %s73
      %p82 = scmp.eq.s32.totalorder %s29, 0
      %p83 = por %p81, %p82
      %p84 = scmp.ne.s32.totalorder %s72, %s73
      %p85 = scmp.eq.s32.totalorder %s30, 3
      %p86 = por %p84, %p85
      %p88 = scmp.ne.s32.totalorder %s73, %s87
      %p89 = scmp.eq.s32.totalorder %s30, 0
      %p90 = por %p88, %p89
      %s92 = sadd.s32 %s91, 1
      %p95 = scmp.eq.s32.totalorder %s24, 3
      %p96 = scmp.ne.s32.totalorder %s91, %s93
      %p97 = scmp.eq.s32.totalorder %s24, 0
      %p98 = por %p96, %p97
      %p99 = scmp.ne.s32.totalorder %s91, %s93
      %p100 = scmp.eq.s32.totalorder %s29, 3
      %p101 = por %p99, %p100
      %p102 = scmp.ne.s32.totalorder %s93, %s94
      %p103 = scmp.eq.s32.totalorder %s29, 0
      %p104 = por %p102, %p103
      %p105 = scmp.ne.s32.totalorder %s93, %s94
      %p106 = scmp.eq.s32.totalorder %s30, 3
      %p107 = por %p105, %p106
      %p109 = scmp.ne.s32.totalorder %s94, %s108
      %p110 = scmp.eq.s32.totalorder %s30, 0
      %p111 = por %p109, %p110
      %s113 = sadd.s32 %s112, 1
      %p116 = scmp.eq.s32.totalorder %s24, 3
      %p117 = scmp.ne.s32.totalorder %s112, %s114
      %p118 = scmp.eq.s32.totalorder %s24, 0
      %p119 = por %p117, %p118
      %p120 = scmp.ne.s32.totalorder %s112, %s114
      %p121 = scmp.eq.s32.totalorder %s29, 3
      %p122 = por %p120, %p121
      %p123 = scmp.ne.s32.totalorder %s114, %s115
      %p124 = scmp.eq.s32.totalorder %s29, 0
      %p125 = por %p123, %p124
      %p126 = scmp.ne.s32.totalorder %s114, %s115
      %p127 = scmp.eq.s32.totalorder %s30, 3
      %p128 = por %p126, %p127
      %p130 = scmp.ne.s32.totalorder %s115, %s129
      %p131 = scmp.eq.s32.totalorder %s30, 0
      %p132 = por %p130, %p131
      %s134 = sadd.s32 %s133, 1
      %p137 = scmp.eq.s32.totalorder %s24, 3
      %p138 = scmp.ne.s32.totalorder %s133, %s135
      %p139 = scmp.eq.s32.totalorder %s24, 0
      %p140 = por %p138, %p139
      %p141 = scmp.ne.s32.totalorder %s133, %s135
      %p142 = scmp.eq.s32.totalorder %s29, 3
      %p143 = por %p141, %p142
      %p144 = scmp.ne.s32.totalorder %s135, %s136
      %p145 = scmp.eq.s32.totalorder %s29, 0
      %p146 = por %p144, %p145
      %p147 = scmp.ne.s32.totalorder %s135, %s136
      %p148 = scmp.eq.s32.totalorder %s30, 3
      %p149 = por %p147, %p148
      %p151 = scmp.ne.s32.totalorder %s136, %s150
      %p152 = scmp.eq.s32.totalorder %s30, 0
      %p153 = por %p151, %p152
      %s155 = sadd.s32 %s154, 1
      %p158 = scmp.eq.s32.totalorder %s24, 3
      %p159 = scmp.ne.s32.totalorder %s154, %s156
      %p160 = scmp.eq.s32.totalorder %s24, 0
      %p161 = por %p159, %p160
      %p162 = scmp.ne.s32.totalorder %s154, %s156
      %p163 = scmp.eq.s32.totalorder %s29, 3
      %p164 = por %p162, %p163
      %p165 = scmp.ne.s32.totalorder %s156, %s157
      %p166 = scmp.eq.s32.totalorder %s29, 0
      %p167 = por %p165, %p166
      %p168 = scmp.ne.s32.totalorder %s156, %s157
      %p169 = scmp.eq.s32.totalorder %s30, 3
      %p170 = por %p168, %p169
      %p172 = scmp.ne.s32.totalorder %s157, %s171
      %p173 = scmp.eq.s32.totalorder %s30, 0
      %p174 = por %p172, %p173
      %s176 = sadd.s32 %s175, 1
      %p179 = scmp.eq.s32.totalorder %s24, 3
      %p180 = scmp.ne.s32.totalorder %s175, %s177
      %p181 = scmp.eq.s32.totalorder %s24, 0
      %p182 = por %p180, %p181
      %p183 = scmp.ne.s32.totalorder %s175, %s177
      %p184 = scmp.eq.s32.totalorder %s29, 3
      %p185 = por %p183, %p184
      %p186 = scmp.ne.s32.totalorder %s177, %s178
      %p187 = scmp.eq.s32.totalorder %s29, 0
      %p188 = por %p186, %p187
      %p189 = scmp.ne.s32.totalorder %s177, %s178
      %p190 = scmp.eq.s32.totalorder %s30, 3
      %p191 = por %p189, %p190
      %p193 = scmp.ne.s32.totalorder %s178, %s192
      %p194 = scmp.eq.s32.totalorder %s30, 0
      %p195 = por %p193, %p194
      %s197 = sadd.s32 %s196, 1
      %p200 = scmp.eq.s32.totalorder %s24, 3
      %p201 = scmp.ne.s32.totalorder %s196, %s198
      %p202 = scmp.eq.s32.totalorder %s24, 0
      %p203 = por %p201, %p202
      %p204 = scmp.ne.s32.totalorder %s196, %s198
      %p205 = scmp.eq.s32.totalorder %s29, 3
      %p206 = por %p204, %p205
      %p207 = scmp.ne.s32.totalorder %s198, %s199
      %p208 = scmp.eq.s32.totalorder %s29, 0
      %p209 = por %p207, %p208
      %p210 = scmp.ne.s32.totalorder %s198, %s199
      %p211 = scmp.eq.s32.totalorder %s30, 3
      %p212 = por %p210, %p211
      %p214 = scmp.ne.s32.totalorder %s199, %s213
      %p215 = scmp.eq.s32.totalorder %s30, 0
      %p216 = por %p214, %p215
      %s218 = sadd.s32 %s217, 1
      %p221 = scmp.eq.s32.totalorder %s24, 3
      %p222 = scmp.ne.s32.totalorder %s217, %s219
      %p223 = scmp.eq.s32.totalorder %s24, 0
      %p224 = por %p222, %p223
      %p225 = scmp.ne.s32.totalorder %s217, %s219
      %p226 = scmp.eq.s32.totalorder %s29, 3
      %p227 = por %p225, %p226
      %p228 = scmp.ne.s32.totalorder %s219, %s220
      %p229 = scmp.eq.s32.totalorder %s29, 0
      %p230 = por %p228, %p229
      %p231 = scmp.ne.s32.totalorder %s219, %s220
      %p232 = scmp.eq.s32.totalorder %s30, 3
      %p233 = por %p231, %p232
      %p235 = scmp.ne.s32.totalorder %s220, %s234
      %p236 = scmp.eq.s32.totalorder %s30, 0
      %p237 = por %p235, %p236
      %s238 = ssub.s32 %s31, %s43
      %s239 = ssub.s32 %s32, %s39
      %s240 = sor.u32 %s238, %s239
      %p241 = scmp.eq.s32.totalorder %s240, 0
      %s243 = sadd.s32 %s242, 1
      %s244 = scalar_select %p241, %s242, %s243
      %p247 = pneg %p241
      %p248 = scmp.eq.s32.totalorder %s24, 3
      %p249 = por %p247, %p248
      %p250 = scmp.ne.s32.totalorder %s242, %s245
      %p251 = scmp.eq.s32.totalorder %s24, 0
      %p252 = por %p250, %p251
      %p253 = scmp.ne.s32.totalorder %s242, %s245
      %p254 = scmp.eq.s32.totalorder %s29, 3
      %p255 = por %p253, %p254
      %p256 = scmp.ne.s32.totalorder %s245, %s246
      %p257 = scmp.eq.s32.totalorder %s29, 0
      %p258 = por %p256, %p257
      %p259 = scmp.ne.s32.totalorder %s245, %s246
      %p260 = scmp.eq.s32.totalorder %s30, 3
      %p261 = por %p259, %p260
      %p263 = scmp.ne.s32.totalorder %s246, %s262
      %p264 = scmp.eq.s32.totalorder %s30, 0
      %p265 = por %p263, %p264
      %p266 = scmp.le.s32.totalorder 1, %s24
      %p267 = scmp.lt.s32.totalorder %s24, 5
      %p268 = pnand %p266, %p267
      %p269 = pneg %p268
      // Predicated region
      $region9: #{tpu_custom_call.1} parent=5 // pred_check
        _
      $region10: #{tpu_custom_call.1} parent=5 // pred_check_branch
        %271 = sbr.rel (%p268) target = $region12
      $region11: #{tpu_custom_call.1} parent=5 // pred_region
        %s272 = ssub.s32 %s24, 1
        // Predicated region
        $region13: #{tpu_custom_call.1} parent=11 // pred_check
          %p273 = pneg %p83
        $region14: #{tpu_custom_call.1} parent=11 // pred_check_branch
          %275 = sbr.rel (%p273) target = $region16
        $region15: #{tpu_custom_call.1} parent=11 // pred_region
          %s277 = ssub.s32 1024, 1024
          %278 = vsyncadd [#allocation6], %s277
          %s279 = sshll.u32 [#allocation5], 4
          %s280 = int_to_ptr.vmem [resolvable:$true] %s279
          %285 = dma.hbm_to_vmem [thread:$0]  %s1, 1024, %s280, [#allocation6], 64, 64, 4
        $region16: #{tpu_custom_call.1} parent=11 // pred_fallthru
          _
        // Predicated region
        $region17: #{tpu_custom_call.1} parent=11 // pred_check
          %p286 = pneg %p104
        $region18: #{tpu_custom_call.1} parent=11 // pred_check_branch
          %288 = sbr.rel (%p286) target = $region20
        $region19: #{tpu_custom_call.1} parent=11 // pred_region
          %s290 = ssub.s32 16, 16
          %291 = vsyncadd [#allocation6], %s290
          %s293 = sshll.u32 [#allocation7], 4
          %s294 = int_to_ptr.vmem [resolvable:$true] %s293
          %296 = dma.hbm_to_vmem [thread:$0]  %s2, 16, %s294, [#allocation6]
        $region20: #{tpu_custom_call.1} parent=11 // pred_fallthru
          _
        // Predicated region
        $region21: #{tpu_custom_call.1} parent=11 // pred_check
          %p297 = pneg %p125
        $region22: #{tpu_custom_call.1} parent=11 // pred_check_branch
          %299 = sbr.rel (%p297) target = $region24
        $region23: #{tpu_custom_call.1} parent=11 // pred_region
          %s301 = ssub.s32 2048, 2048
          %302 = vsyncadd [#allocation9], %s301
          %s303 = sshll.u32 [#allocation8], 4
          %s304 = int_to_ptr.vmem [resolvable:$true] %s303
          %309 = dma.hbm_to_vmem [thread:$0]  %s3, 2048, %s304, [#allocation9], 128, 128, 8
        $region24: #{tpu_custom_call.1} parent=11 // pred_fallthru
          _
        // Predicated region
        $region25: #{tpu_custom_call.1} parent=11 // pred_check
          %p310 = pneg %p146
        $region26: #{tpu_custom_call.1} parent=11 // pred_check_branch
          %312 = sbr.rel (%p310) target = $region28
        $region27: #{tpu_custom_call.1} parent=11 // pred_region
          _
        $region28: #{tpu_custom_call.1} parent=11 // pred_fallthru
          _
        // Predicated region
        $region29: #{tpu_custom_call.1} parent=11 // pred_check
          %p313 = pneg %p167
        $region30: #{tpu_custom_call.1} parent=11 // pred_check_branch
          %315 = sbr.rel (%p313) target = $region32
        $region31: #{tpu_custom_call.1} parent=11 // pred_region
          _
        $region32: #{tpu_custom_call.1} parent=11 // pred_fallthru
          _
        // Predicated region
        $region33: #{tpu_custom_call.1} parent=11 // pred_check
          %p316 = pneg %p188
        $region34: #{tpu_custom_call.1} parent=11 // pred_check_branch
          %318 = sbr.rel (%p316) target = $region36
        $region35: #{tpu_custom_call.1} parent=11 // pred_region
          %s320 = ssub.s32 256, 256
          %321 = vsyncadd [#allocation9], %s320
          %s322 = sshll.u32 [#allocation10], 4
          %s323 = int_to_ptr.vmem [resolvable:$true] %s322
          %328 = dma.hbm_to_vmem [thread:$0]  %s6, 256, %s323, [#allocation9], 128, 128, 8
        $region36: #{tpu_custom_call.1} parent=11 // pred_fallthru
          _
        // Predicated region
        $region37: #{tpu_custom_call.1} parent=11 // pred_check
          %p329 = pneg %p209
        $region38: #{tpu_custom_call.1} parent=11 // pred_check_branch
          %331 = sbr.rel (%p329) target = $region40
        $region39: #{tpu_custom_call.1} parent=11 // pred_region
          %s333 = ssub.s32 1024, 1024
          %334 = vsyncadd [#allocation12], %s333
          %s335 = sshll.u32 [#allocation11], 4
          %s336 = int_to_ptr.vmem [resolvable:$true] %s335
          %341 = dma.hbm_to_vmem [thread:$0]  %s7, 1024, %s336, [#allocation12], 64, 64, 4
        $region40: #{tpu_custom_call.1} parent=11 // pred_fallthru
          _
        // Predicated region
        $region41: #{tpu_custom_call.1} parent=11 // pred_check
          %p342 = pneg %p230
        $region42: #{tpu_custom_call.1} parent=11 // pred_check_branch
          %344 = sbr.rel (%p342) target = $region44
        $region43: #{tpu_custom_call.1} parent=11 // pred_region
          _
        $region44: #{tpu_custom_call.1} parent=11 // pred_fallthru
          _
      $region12: #{tpu_custom_call.1} parent=5 // pred_fallthru
        _
      %p345 = scmp.lt.s32.totalorder %s24, 4
      // Predicated region
      $region45: #{tpu_custom_call.1} parent=5 // pred_check
        %p346 = pneg %p345
      $region46: #{tpu_custom_call.1} parent=5 // pred_check_branch
        %348 = sbr.rel (%p346) target = $region48
      $region47: #{tpu_custom_call.1} parent=5 // pred_region
        // Predicated region
        $region49: #{tpu_custom_call.1} parent=47 // pred_check
          %p349 = pneg %p56
        $region50: #{tpu_custom_call.1} parent=47 // pred_check_branch
          %351 = sbr.rel (%p349) target = $region52
        $region51: #{tpu_custom_call.1} parent=47 // pred_region
          %s352 = sand.u32 %s46, 1
          %s353 = scalar_lea.sflag [#allocation3], %s352
          %s354 = sand.u32 %s46, 1
          %s355 = smul.addr %s354, 8
          %s356 = scalar_lea.vmem [#allocation2], %s355
          %s358 = ssub.s32 128, 128
          %359 = vsyncadd %s353, %s358
          %s360 = smul.addr %s31, 2
          %s361 = smul.addr %s360, 64
          %s362 = scalar_lea.hbm %s0, %s361
          %s363 = sshll.u32 %s356, 4
          %s364 = int_to_ptr.vmem [resolvable:$true] %s363
          %369 = dma.hbm_to_vmem [thread:$0]  %s362, 128, %s364, %s353, 64, 64, 4
        $region52: #{tpu_custom_call.1} parent=47 // pred_fallthru
          _
      $region48: #{tpu_custom_call.1} parent=5 // pred_fallthru
        _
      %p370 = scmp.le.s32.totalorder 1, %s24
      %p371 = scmp.lt.s32.totalorder %s24, 5
      %p372 = pnand %p370, %p371
      %p373 = pneg %p372
      // Predicated region
      $region53: #{tpu_custom_call.1} parent=5 // pred_check
        _
      $region54: #{tpu_custom_call.1} parent=5 // pred_check_branch
        %375 = sbr.rel (%p372) target = $region56
      $region55: #{tpu_custom_call.1} parent=5 // pred_region
        %s376 = ssub.s32 %s24, 1
        %s377 = sand.u32 %s49, 1
        %s378 = scalar_lea.sflag [#allocation3], %s377
        %s379 = sand.u32 %s49, 1
        %s380 = smul.addr %s379, 8
        %s381 = scalar_lea.vmem [#allocation2], %s380
        // Predicated region
        $region57: #{tpu_custom_call.1} parent=55 // pred_check
          %p382 = pneg %p62
        $region58: #{tpu_custom_call.1} parent=55 // pred_check_branch
          %384 = sbr.rel (%p382) target = $region60
        $region59: #{tpu_custom_call.1} parent=55 // pred_region
          %385 = dma.done %s378, 128
        $region60: #{tpu_custom_call.1} parent=55 // pred_fallthru
          _
        // Predicated region
        $region61: #{tpu_custom_call.1} parent=55 // pred_check
          %p386 = pneg %p83
        $region62: #{tpu_custom_call.1} parent=55 // pred_check_branch
          %388 = sbr.rel (%p386) target = $region64
        $region63: #{tpu_custom_call.1} parent=55 // pred_region
          %389 = dma.done [#allocation6], 1024
        $region64: #{tpu_custom_call.1} parent=55 // pred_fallthru
          _
        // Predicated region
        $region65: #{tpu_custom_call.1} parent=55 // pred_check
          %p390 = pneg %p104
        $region66: #{tpu_custom_call.1} parent=55 // pred_check_branch
          %392 = sbr.rel (%p390) target = $region68
        $region67: #{tpu_custom_call.1} parent=55 // pred_region
          %393 = dma.done [#allocation6], 16
        $region68: #{tpu_custom_call.1} parent=55 // pred_fallthru
          _
        // Predicated region
        $region69: #{tpu_custom_call.1} parent=55 // pred_check
          %p394 = pneg %p125
        $region70: #{tpu_custom_call.1} parent=55 // pred_check_branch
          %396 = sbr.rel (%p394) target = $region72
        $region71: #{tpu_custom_call.1} parent=55 // pred_region
          %397 = dma.done [#allocation9], 2048
        $region72: #{tpu_custom_call.1} parent=55 // pred_fallthru
          _
        // Predicated region
        $region73: #{tpu_custom_call.1} parent=55 // pred_check
          %p398 = pneg %p188
        $region74: #{tpu_custom_call.1} parent=55 // pred_check_branch
          %400 = sbr.rel (%p398) target = $region76
        $region75: #{tpu_custom_call.1} parent=55 // pred_region
          %401 = dma.done [#allocation9], 256
        $region76: #{tpu_custom_call.1} parent=55 // pred_fallthru
          _
        // Predicated region
        $region77: #{tpu_custom_call.1} parent=55 // pred_check
          %p402 = pneg %p209
        $region78: #{tpu_custom_call.1} parent=55 // pred_check_branch
          %404 = sbr.rel (%p402) target = $region80
        $region79: #{tpu_custom_call.1} parent=55 // pred_region
          %405 = dma.done [#allocation12], 1024
        $region80: #{tpu_custom_call.1} parent=55 // pred_fallthru
          _
        %s406 = sand.u32 %s49, 1
        %s407 = scalar_lea.sflag [#allocation3], %s406
        %s408 = sand.u32 %s49, 1
        %s409 = smul.addr %s408, 8
        %s410 = scalar_lea.vmem [#allocation2], %s409
        %p411 = pneg %p62
        %p412 = pneg %p59
        %p413 = pneg %p83
        %p414 = pneg %p80
        %p415 = pneg %p104
        %p416 = pneg %p101
        %p417 = pneg %p125
        %p418 = pneg %p122
        %p419 = pneg %p146
        %p420 = pneg %p143
        %p421 = pneg %p167
        %p422 = pneg %p164
        %p423 = pneg %p188
        %p424 = pneg %p185
        %p425 = pneg %p209
        %p426 = pneg %p206
        %p427 = pneg %p230
        %p428 = pneg %p227
        %p429 = pneg %p258
        %p430 = pneg %p255
        %s431 = sand.u32 %s245, 1
        %s432 = scalar_lea.sflag [#allocation4], %s431
        %s433 = sand.u32 %s245, 1
        %s434 = smul.addr %s433, 8
        %s435 = scalar_lea.vmem [#allocation13], %s434
        %s437 = smul.u32 %s34, 8
        %v438 = vld [vmem:[%s381] sm:$0xf]
        %v439 = vld [vmem:[%s381 + $0x4] sm:$0xf]
        %s440 = sshra.s32 %s437, 3
        %s441 = sand.u32 %s437, 7
        %s442 = smul.addr %s440, 4
        %s443 = scalar_lea.vmem %s381, %s442 [#allocation2]
        %v444 = vld [vmem:[%s443] sm:$0xf]
        %v445 = vld [vmem:[#allocation5] sm:$0xf]
        %v446 = vld [vmem:[#allocation5 + $0x4] sm:$0xf]
        %v447 = vld [vmem:[#allocation5 + $0x8] sm:$0xf]
        %v448 = vld [vmem:[#allocation5 + $0xc] sm:$0xf]
        %v449 = vld [vmem:[#allocation5 + $0x10] sm:$0xf]
        %v450 = vld [vmem:[#allocation5 + $0x14] sm:$0xf]
        %v451 = vld [vmem:[#allocation5 + $0x18] sm:$0xf]
        %v452 = vld [vmem:[#allocation5 + $0x1c] sm:$0xf]
        %v453 = vld [vmem:[#allocation5 + $0x20] sm:$0xf]
        %v454 = vld [vmem:[#allocation5 + $0x24] sm:$0xf]
        %v455 = vld [vmem:[#allocation5 + $0x28] sm:$0xf]
        %v456 = vld [vmem:[#allocation5 + $0x2c] sm:$0xf]
        %v457 = vld [vmem:[#allocation5 + $0x30] sm:$0xf]
        %v458 = vld [vmem:[#allocation5 + $0x34] sm:$0xf]
        %v459 = vld [vmem:[#allocation5 + $0x38] sm:$0xf]
        %v460 = vld [vmem:[#allocation5 + $0x3c] sm:$0xf]
        %v461 = vld [vmem:[#allocation7] sm:$0x1]
        %v463 = vlaneseq
        %v464 = vshrl.u32 %v463, 7
        %v465 = vsub.s32 0, %v464
        %v466 = vrot.slane %v461, %v465
        %v484 = vunpack.c.l.b16 %v445
        %v485 = vunpack.c.l.b16 %v446
        %v486 = vunpack.c.l.b16 %v447
        %v487 = vunpack.c.l.b16 %v448
        %v488 = vunpack.c.l.b16 %v449
        %v489 = vunpack.c.l.b16 %v450
        %v490 = vunpack.c.l.b16 %v451
        %v491 = vunpack.c.l.b16 %v452
        %v492 = vunpack.c.l.b16 %v453
        %v493 = vunpack.c.l.b16 %v454
        %v494 = vunpack.c.l.b16 %v455
        %v495 = vunpack.c.l.b16 %v456
        %v496 = vunpack.c.l.b16 %v457
        %v497 = vunpack.c.l.b16 %v458
        %v498 = vunpack.c.l.b16 %v459
        %v499 = vunpack.c.l.b16 %v460
        %v500 = vpack.c.b16 %v485, %v484
        %v501 = vpack.c.b16 %v487, %v486
        %v502 = vpack.c.b16 %v489, %v488
        %v503 = vpack.c.b16 %v491, %v490
        %v504 = vpack.c.b16 %v493, %v492
        %v505 = vpack.c.b16 %v495, %v494
        %v506 = vpack.c.b16 %v497, %v496
        %v507 = vpack.c.b16 %v499, %v498
        %516 = vmatprep.subr.bf16.mxu0 0
        %517 = vmatpush1.bf16.msra.mxu0 %v500
        %518 = vmatprep.subr.bf16.mxu0 0
        %519 = vmatpush1.bf16.msra.mxu0 %v501
        %520 = vmatprep.subr.bf16.mxu0 0
        %521 = vmatpush1.bf16.msra.mxu0 %v502
        %522 = vmatprep.subr.bf16.mxu0 0
        %523 = vmatpush1.bf16.msra.mxu0 %v503
        %524 = vmatprep.subr.bf16.mxu0 0
        %525 = vmatpush1.bf16.msra.mxu0 %v504
        %526 = vmatprep.subr.bf16.mxu0 0
        %527 = vmatpush1.bf16.msra.mxu0 %v505
        %528 = vmatprep.subr.bf16.mxu0 0
        %529 = vmatpush1.bf16.msra.mxu0 %v506
        %530 = vmatprep.subr.bf16.mxu0 0
        %531 = vmatpush1.bf16.msra.mxu0 %v507
        %532 = vmatprep.subr.bf16.mxu0 0
        %533 = vmatpush1.bf16.msra.mxu0 0
        %534 = vmatprep.subr.bf16.mxu0 0
        %535 = vmatpush1.bf16.msra.mxu0 0
        %536 = vmatprep.subr.bf16.mxu0 0
        %537 = vmatpush1.bf16.msra.mxu0 0
        %538 = vmatprep.subr.bf16.mxu0 0
        %539 = vmatpush1.bf16.msra.mxu0 0
        %540 = vmatprep.subr.bf16.mxu0 0
        %541 = vmatpush1.bf16.msra.mxu0 0
        %542 = vmatprep.subr.bf16.mxu0 0
        %543 = vmatpush1.bf16.msra.mxu0 0
        %544 = vmatprep.subr.bf16.mxu0 0
        %545 = vmatpush1.bf16.msra.mxu0 0
        %546 = vmatprep.subr.bf16.mxu0 0
        %547 = vmatpush1.bf16.msra.mxu0 0
        %548 = vmatprep.mubr.bf16.mxu0 0
        %549 = vmatmul.mubr.bf16.gmra.mrb[0].mxu0 %v444
        %v550 = vpop.f32.mrb[0].mxu0
        %v551 = vadd.f32 %v466, %v550
        %v552 = vpop.f32.mrb[0].mxu0
        %v553 = vpop.f32.mrb[0].mxu0
        %v554 = vpop.f32.mrb[0].mxu0
        %555 = vdwg.mxu0
        %v556 = vld [vmem:[#allocation8] sm:$0xff]
        %v557 = vld [vmem:[#allocation8 + $0x8] sm:$0xff]
        %v558 = vld [vmem:[#allocation8 + $0x10] sm:$0xff]
        %v559 = vld [vmem:[#allocation8 + $0x18] sm:$0xff]
        %v560 = vld [vmem:[#allocation8 + $0x20] sm:$0xff]
        %v561 = vld [vmem:[#allocation8 + $0x28] sm:$0xff]
        %v562 = vld [vmem:[#allocation8 + $0x30] sm:$0xff]
        %v563 = vld [vmem:[#allocation8 + $0x38] sm:$0xff]
        %v564 = vld [vmem:[#allocation8 + $0x40] sm:$0xff]
        %v565 = vld [vmem:[#allocation8 + $0x48] sm:$0xff]
        %v566 = vld [vmem:[#allocation8 + $0x50] sm:$0xff]
        %v567 = vld [vmem:[#allocation8 + $0x58] sm:$0xff]
        %v568 = vld [vmem:[#allocation8 + $0x60] sm:$0xff]
        %v569 = vld [vmem:[#allocation8 + $0x68] sm:$0xff]
        %v570 = vld [vmem:[#allocation8 + $0x70] sm:$0xff]
        %v571 = vld [vmem:[#allocation8 + $0x78] sm:$0xff]
        %v572 = vld [vmem:[%s4] sm:$0x3]
        %v574 = vlaneseq
        %v575 = vshrl.u32 %v574, 7
        %v576 = vsub.s32 0, %v575
        %v577 = vrot.slane %v572, %v576
        %v578 = vlaneseq
        %v579 = vshrl.u32 %v578, 7
        %v580 = vsub.s32 1, %v579
        %v581 = vrot.slane %v572, %v580
        %v586 = vunpack.c.l.b16 %v438
        %v587 = vunpack.c.l.b16 %v439
        %v588 = vpack.c.b16 %v587, %v586
        %v606 = vunpack.c.l.b16 %v556
        %v607 = vunpack.c.h.b16 %v556
        %v608 = vunpack.c.l.b16 %v557
        %v609 = vunpack.c.h.b16 %v557
        %v610 = vunpack.c.l.b16 %v558
        %v611 = vunpack.c.h.b16 %v558
        %v612 = vunpack.c.l.b16 %v559
        %v613 = vunpack.c.h.b16 %v559
        %v614 = vunpack.c.l.b16 %v560
        %v615 = vunpack.c.h.b16 %v560
        %v616 = vunpack.c.l.b16 %v561
        %v617 = vunpack.c.h.b16 %v561
        %v618 = vunpack.c.l.b16 %v562
        %v619 = vunpack.c.h.b16 %v562
        %v620 = vunpack.c.l.b16 %v563
        %v621 = vunpack.c.h.b16 %v563
        %v622 = vunpack.c.l.b16 %v564
        %v623 = vunpack.c.h.b16 %v564
        %v624 = vunpack.c.l.b16 %v565
        %v625 = vunpack.c.h.b16 %v565
        %v626 = vunpack.c.l.b16 %v566
        %v627 = vunpack.c.h.b16 %v566
        %v628 = vunpack.c.l.b16 %v567
        %v629 = vunpack.c.h.b16 %v567
        %v630 = vunpack.c.l.b16 %v568
        %v631 = vunpack.c.h.b16 %v568
        %v632 = vunpack.c.l.b16 %v569
        %v633 = vunpack.c.h.b16 %v569
        %v634 = vunpack.c.l.b16 %v570
        %v635 = vunpack.c.h.b16 %v570
        %v636 = vunpack.c.l.b16 %v571
        %v637 = vunpack.c.h.b16 %v571
        %v638 = vpack.c.b16 %v608, %v606
        %v639 = vpack.c.b16 %v609, %v607
        %v640 = vpack.c.b16 %v612, %v610
        %v641 = vpack.c.b16 %v613, %v611
        %v642 = vpack.c.b16 %v616, %v614
        %v643 = vpack.c.b16 %v617, %v615
        %v644 = vpack.c.b16 %v620, %v618
        %v645 = vpack.c.b16 %v621, %v619
        %v646 = vpack.c.b16 %v624, %v622
        %v647 = vpack.c.b16 %v625, %v623
        %v648 = vpack.c.b16 %v628, %v626
        %v649 = vpack.c.b16 %v629, %v627
        %v650 = vpack.c.b16 %v632, %v630
        %v651 = vpack.c.b16 %v633, %v631
        %v652 = vpack.c.b16 %v636, %v634
        %v653 = vpack.c.b16 %v637, %v635
        %670 = vmatprep.subr.bf16.mxu0 %v639
        %671 = vmatpush1.bf16.msra.mxu0 %v638
        %672 = vmatprep.subr.bf16.mxu0 %v641
        %673 = vmatpush1.bf16.msra.mxu0 %v640
        %674 = vmatprep.subr.bf16.mxu0 %v643
        %675 = vmatpush1.bf16.msra.mxu0 %v642
        %676 = vmatprep.subr.bf16.mxu0 %v645
        %677 = vmatpush1.bf16.msra.mxu0 %v644
        %678 = vmatprep.subr.bf16.mxu0 %v647
        %679 = vmatpush1.bf16.msra.mxu0 %v646
        %680 = vmatprep.subr.bf16.mxu0 %v649
        %681 = vmatpush1.bf16.msra.mxu0 %v648
        %682 = vmatprep.subr.bf16.mxu0 %v651
        %683 = vmatpush1.bf16.msra.mxu0 %v650
        %684 = vmatprep.subr.bf16.mxu0 %v653
        %685 = vmatpush1.bf16.msra.mxu0 %v652
        %686 = vmatprep.subr.bf16.mxu0 0
        %687 = vmatpush1.bf16.msra.mxu0 0
        %688 = vmatprep.subr.bf16.mxu0 0
        %689 = vmatpush1.bf16.msra.mxu0 0
        %690 = vmatprep.subr.bf16.mxu0 0
        %691 = vmatpush1.bf16.msra.mxu0 0
        %692 = vmatprep.subr.bf16.mxu0 0
        %693 = vmatpush1.bf16.msra.mxu0 0
        %694 = vmatprep.subr.bf16.mxu0 0
        %695 = vmatpush1.bf16.msra.mxu0 0
        %696 = vmatprep.subr.bf16.mxu0 0
        %697 = vmatpush1.bf16.msra.mxu0 0
        %698 = vmatprep.subr.bf16.mxu0 0
        %699 = vmatpush1.bf16.msra.mxu0 0
        %700 = vmatprep.subr.bf16.mxu0 0
        %701 = vmatpush1.bf16.msra.mxu0 0
        %702 = vmatprep.mubr.bf16.mxu0 0
        %703 = vmatmul.mubr.bf16.gmra.mrb[0].mxu0 %v588
        %v704 = vpop.f32.mrb[0].mxu0
        %v705 = vadd.f32 %v577, %v704
        %v706 = vpop.f32.mrb[0].mxu0
        %v707 = vadd.f32 %v581, %v706
        %v708 = vpop.f32.mrb[0].mxu0
        %v709 = vadd.f32 %v577, %v708
        %v710 = vpop.f32.mrb[0].mxu0
        %v711 = vadd.f32 %v581, %v710
        %712 = vdwg.mxu0
        %s713 = scalar_lea.vmem %s5, %s437
        %v714 = vld [vmem:[%s713] sm:$0xff]
        %s715 = scalar_lea.vmem [#allocation10], %s437
        %v716 = vld [vmem:[%s715] sm:$0xff]
        %v717 = vld [vmem:[%s5] sm:$0xff]
        %v718 = vld [vmem:[%s5 + $0x8] sm:$0xff]
        %v719 = vld [vmem:[#allocation10] sm:$0xff]
        %v720 = vld [vmem:[#allocation10 + $0x8] sm:$0xff]
        %v721 = vmul.f32 %v551, %v714
        %vm722 = vcmask 1048064
        %723 = vrot.lane.b32.xlu0 %v551, 64
        %v724 = vpop.permute.xlu0 %723
        %v725 = vsel %vm722, %v724, %v551
        %726 = vrot.lane.b32.xlu0 %v725, 64
        %v727 = vpop.permute.xlu0 %726
        %v728 = vsel %vm722, %v727, %v551
        %730 = vrot.lane.b32.xlu0 %v716, 32
        %v731 = vpop.permute.xlu0 %730
        %v733 = vmul.f32 %v728, %v731
        %735 = vrot.lane.b32.xlu0 %v733, 96
        %v736 = vpop.permute.xlu0 %735
        %v738 = vadd.f32 %v721, %v736
        %v739 = vmul.f32 %v705, %v717
        %v740 = vmul.f32 %v709, %v718
        %741 = vrot.lane.b32.xlu0 %v705, 64
        %v742 = vpop.permute.xlu0 %741
        %v743 = vsel %vm722, %v742, %v705
        %744 = vrot.lane.b32.xlu0 %v709, 64
        %v745 = vpop.permute.xlu0 %744
        %v746 = vsel %vm722, %v745, %v709
        %747 = vrot.lane.b32.xlu0 %v743, 64
        %v748 = vpop.permute.xlu0 %747
        %749 = vrot.lane.b32.xlu0 %v746, 64
        %v750 = vpop.permute.xlu0 %749
        %v751 = vsel %vm722, %v748, %v705
        %v752 = vsel %vm722, %v750, %v709
        %755 = vrot.lane.b32.xlu0 %v719, 32
        %v756 = vpop.permute.xlu0 %755
        %757 = vrot.lane.b32.xlu0 %v720, 32
        %v758 = vpop.permute.xlu0 %757
        %v761 = vmul.f32 %v751, %v756
        %v762 = vmul.f32 %v752, %v758
        %765 = vrot.lane.b32.xlu0 %v761, 96
        %v766 = vpop.permute.xlu0 %765
        %767 = vrot.lane.b32.xlu0 %v762, 96
        %v768 = vpop.permute.xlu0 %767
        %v771 = vadd.f32 %v739, %v766
        %v772 = vadd.f32 %v740, %v768
        %v773 = vpack.c.bf16 %v738, %v738
        %v774 = vpack.c.bf16 %v772, %v771
        %vm775 = vcmask 523264
        %v777 = vsel %vm775, %v773, 0
        %v780 = vsel %vm775, %v774, 0
        %782 = vmatprep.subr.bf16.mxu0 0
        %783 = vmatpush1.bf16.xpose.msra.mxu0 %v780
        %784 = vmatprep.subr.bf16.mxu0 0
        %785 = vmatpush1.bf16.xpose.msra.mxu0 0
        %786 = vmatprep.subr.bf16.mxu0 0
        %787 = vmatpush1.bf16.xpose.msra.mxu0 0
        %788 = vmatprep.subr.bf16.mxu0 0
        %789 = vmatpush1.bf16.xpose.msra.mxu0 0
        %790 = vmatprep.subr.bf16.mxu0 0
        %791 = vmatpush1.bf16.xpose.msra.mxu0 0
        %792 = vmatprep.subr.bf16.mxu0 0
        %793 = vmatpush1.bf16.xpose.msra.mxu0 0
        %794 = vmatprep.subr.bf16.mxu0 0
        %795 = vmatpush1.bf16.xpose.msra.mxu0 0
        %796 = vmatprep.subr.bf16.mxu0 0
        %797 = vmatpush1.bf16.xpose.msra.mxu0 0
        %798 = vmatprep.subr.bf16.mxu0 0
        %799 = vmatpush1.bf16.xpose.msra.mxu0 0
        %800 = vmatprep.subr.bf16.mxu0 0
        %801 = vmatpush1.bf16.xpose.msra.mxu0 0
        %802 = vmatprep.subr.bf16.mxu0 0
        %803 = vmatpush1.bf16.xpose.msra.mxu0 0
        %804 = vmatprep.subr.bf16.mxu0 0
        %805 = vmatpush1.bf16.xpose.msra.mxu0 0
        %806 = vmatprep.subr.bf16.mxu0 0
        %807 = vmatpush1.bf16.xpose.msra.mxu0 0
        %808 = vmatprep.subr.bf16.mxu0 0
        %809 = vmatpush1.bf16.xpose.msra.mxu0 0
        %810 = vmatprep.subr.bf16.mxu0 0
        %811 = vmatpush1.bf16.xpose.msra.mxu0 0
        %812 = vmatprep.subr.bf16.mxu0 0
        %813 = vmatpush1.bf16.xpose.msra.mxu0 0
        %814 = vmatprep.mubr.bf16.mxu0 0
        %815 = vmatmul.mubr.bf16.gmra.mrb[0].mxu0 %v777
        %v816 = vpop.f32.mrb[0].mxu0
        %v817 = vadd.f32 0.0, %v816
        %v818 = vpop.f32.mrb[0].mxu0
        %v819 = vpop.f32.mrb[0].mxu0
        %v820 = vpop.f32.mrb[0].mxu0
        %821 = vdwg.mxu0
        %vm822 = vcmask 130048
        %v823 = vsel %vm822, %v817, -inf
        %824 = vmax.xlane.f32.xlu0 %v823
        %v825 = vpop.xlane.xlu0 %824
        %v826 = vsub.f32 %v817, %v825
        %v827 = vmul.f32 %v826, 1.442695
        %v828 = vpow.pop %v827
        %v829 = vsel %vm822, %v828, 0.0
        %830 = vadd.xlane.f32.xlu0 %v829
        %v831 = vpop.xlane.xlu0 %830
        %v832 = vpack.c.bf16 %v828, %v828
        %v833 = vpack.c.bf16 %v711, %v707
        %v835 = vsel %vm822, %v832, 0
        %837 = vmatprep.subr.bf16.mxu0 0
        %838 = vmatpush1.bf16.msra.mxu0 %v833
        %839 = vmatprep.subr.bf16.mxu0 0
        %840 = vmatpush1.bf16.msra.mxu0 0
        %841 = vmatprep.subr.bf16.mxu0 0
        %842 = vmatpush1.bf16.msra.mxu0 0
        %843 = vmatprep.subr.bf16.mxu0 0
        %844 = vmatpush1.bf16.msra.mxu0 0
        %845 = vmatprep.subr.bf16.mxu0 0
        %846 = vmatpush1.bf16.msra.mxu0 0
        %847 = vmatprep.subr.bf16.mxu0 0
        %848 = vmatpush1.bf16.msra.mxu0 0
        %849 = vmatprep.subr.bf16.mxu0 0
        %850 = vmatpush1.bf16.msra.mxu0 0
        %851 = vmatprep.subr.bf16.mxu0 0
        %852 = vmatpush1.bf16.msra.mxu0 0
        %853 = vmatprep.subr.bf16.mxu0 0
        %854 = vmatpush1.bf16.msra.mxu0 0
        %855 = vmatprep.subr.bf16.mxu0 0
        %856 = vmatpush1.bf16.msra.mxu0 0
        %857 = vmatprep.subr.bf16.mxu0 0
        %858 = vmatpush1.bf16.msra.mxu0 0
        %859 = vmatprep.subr.bf16.mxu0 0
        %860 = vmatpush1.bf16.msra.mxu0 0
        %861 = vmatprep.subr.bf16.mxu0 0
        %862 = vmatpush1.bf16.msra.mxu0 0
        %863 = vmatprep.subr.bf16.mxu0 0
        %864 = vmatpush1.bf16.msra.mxu0 0
        %865 = vmatprep.subr.bf16.mxu0 0
        %866 = vmatpush1.bf16.msra.mxu0 0
        %867 = vmatprep.subr.bf16.mxu0 0
        %868 = vmatpush1.bf16.msra.mxu0 0
        %869 = vmatprep.mubr.bf16.mxu0 0
        %870 = vmatmul.mubr.bf16.gmra.mrb[0].mxu0 %v835
        %v871 = vpop.f32.mrb[0].mxu0
        %v872 = vadd.f32 0.0, %v871
        %v873 = vpop.f32.mrb[0].mxu0
        %v874 = vpop.f32.mrb[0].mxu0
        %v875 = vpop.f32.mrb[0].mxu0
        %876 = vdwg.mxu0
        %v877 = vrcp.pop %v831
        %v878 = vmul.f32 %v872, %v877
        %880 = vrot.lane.b32.xlu0 %v714, 64
        %v881 = vpop.permute.xlu0 %880
        %v883 = vmul.f32 %v551, %v881
        %885 = vrot.lane.b32.xlu0 %v551, 64
        %v886 = vpop.permute.xlu0 %885
        %888 = vrot.lane.b32.xlu0 %v886, 64
        %v889 = vpop.permute.xlu0 %888
        %v890 = vsel %vm722, %v889, %v886
        %891 = vrot.lane.b32.xlu0 %v890, 64
        %v892 = vpop.permute.xlu0 %891
        %v893 = vsel %vm722, %v892, %v886
        %v894 = vmul.f32 %v893, %v731
        %896 = vrot.lane.b32.xlu0 %v894, 32
        %v897 = vpop.permute.xlu0 %896
        %v899 = vadd.f32 %v883, %v897
        %902 = vrot.lane.b32.xlu0 %v717, 64
        %v903 = vpop.permute.xlu0 %902
        %904 = vrot.lane.b32.xlu0 %v718, 64
        %v905 = vpop.permute.xlu0 %904
        %v908 = vmul.f32 %v705, %v903
        %v909 = vmul.f32 %v709, %v905
        %912 = vrot.lane.b32.xlu0 %v705, 64
        %v913 = vpop.permute.xlu0 %912
        %914 = vrot.lane.b32.xlu0 %v709, 64
        %v915 = vpop.permute.xlu0 %914
        %918 = vrot.lane.b32.xlu0 %v913, 64
        %v919 = vpop.permute.xlu0 %918
        %v920 = vsel %vm722, %v919, %v913
        %921 = vrot.lane.b32.xlu0 %v915, 64
        %v922 = vpop.permute.xlu0 %921
        %v923 = vsel %vm722, %v922, %v915
        %924 = vrot.lane.b32.xlu0 %v920, 64
        %v925 = vpop.permute.xlu0 %924
        %926 = vrot.lane.b32.xlu0 %v923, 64
        %v927 = vpop.permute.xlu0 %926
        %v928 = vsel %vm722, %v925, %v913
        %v929 = vsel %vm722, %v927, %v915
        %v930 = vmul.f32 %v928, %v756
        %v931 = vmul.f32 %v929, %v758
        %934 = vrot.lane.b32.xlu0 %v930, 32
        %v935 = vpop.permute.xlu0 %934
        %936 = vrot.lane.b32.xlu0 %v931, 32
        %v937 = vpop.permute.xlu0 %936
        %v940 = vadd.f32 %v908, %v935
        %v941 = vadd.f32 %v909, %v937
        %v942 = vpack.c.bf16 %v899, %v899
        %v943 = vpack.c.bf16 %v941, %v940
        %945 = vrot.lane.b32.xlu0 %v942, 64
        %v946 = vpop.permute.xlu0 %945
        %948 = vrot.lane.b32.xlu0 %v943, 64
        %v949 = vpop.permute.xlu0 %948
        %v951 = vsel %vm775, %v946, 0
        %v954 = vsel %vm775, %v949, 0
        %956 = vmatprep.subr.bf16.mxu0 0
        %957 = vmatpush1.bf16.xpose.msra.mxu0 %v954
        %958 = vmatprep.subr.bf16.mxu0 0
        %959 = vmatpush1.bf16.xpose.msra.mxu0 0
        %960 = vmatprep.subr.bf16.mxu0 0
        %961 = vmatpush1.bf16.xpose.msra.mxu0 0
        %962 = vmatprep.subr.bf16.mxu0 0
        %963 = vmatpush1.bf16.xpose.msra.mxu0 0
        %964 = vmatprep.subr.bf16.mxu0 0
        %965 = vmatpush1.bf16.xpose.msra.mxu0 0
        %966 = vmatprep.subr.bf16.mxu0 0
        %967 = vmatpush1.bf16.xpose.msra.mxu0 0
        %968 = vmatprep.subr.bf16.mxu0 0
        %969 = vmatpush1.bf16.xpose.msra.mxu0 0
        %970 = vmatprep.subr.bf16.mxu0 0
        %971 = vmatpush1.bf16.xpose.msra.mxu0 0
        %972 = vmatprep.subr.bf16.mxu0 0
        %973 = vmatpush1.bf16.xpose.msra.mxu0 0
        %974 = vmatprep.subr.bf16.mxu0 0
        %975 = vmatpush1.bf16.xpose.msra.mxu0 0
        %976 = vmatprep.subr.bf16.mxu0 0
        %977 = vmatpush1.bf16.xpose.msra.mxu0 0
        %978 = vmatprep.subr.bf16.mxu0 0
        %979 = vmatpush1.bf16.xpose.msra.mxu0 0
        %980 = vmatprep.subr.bf16.mxu0 0
        %981 = vmatpush1.bf16.xpose.msra.mxu0 0
        %982 = vmatprep.subr.bf16.mxu0 0
        %983 = vmatpush1.bf16.xpose.msra.mxu0 0
        %984 = vmatprep.subr.bf16.mxu0 0
        %985 = vmatpush1.bf16.xpose.msra.mxu0 0
        %986 = vmatprep.subr.bf16.mxu0 0
        %987 = vmatpush1.bf16.xpose.msra.mxu0 0
        %988 = vmatprep.mubr.bf16.mxu0 0
        %989 = vmatmul.mubr.bf16.gmra.mrb[0].mxu0 %v951
        %v990 = vpop.f32.mrb[0].mxu0
        %v991 = vadd.f32 0.0, %v990
        %v992 = vpop.f32.mrb[0].mxu0
        %v993 = vpop.f32.mrb[0].mxu0
        %v994 = vpop.f32.mrb[0].mxu0
        %995 = vdwg.mxu0
        %v996 = vsel %vm822, %v991, -inf
        %997 = vmax.xlane.f32.xlu0 %v996
        %v998 = vpop.xlane.xlu0 %997
        %v999 = vsub.f32 %v991, %v998
        %v1000 = vmul.f32 %v999, 1.442695
        %v1001 = vpow.pop %v1000
        %v1002 = vsel %vm822, %v1001, 0.0
        %1003 = vadd.xlane.f32.xlu0 %v1002
        %v1004 = vpop.xlane.xlu0 %1003
        %v1005 = vpack.c.bf16 %v1001, %v1001
        %1007 = vrot.lane.b32.xlu0 %v833, 64
        %v1008 = vpop.permute.xlu0 %1007
        %v1011 = vsel %vm822, %v1005, 0
        %1013 = vmatprep.subr.bf16.mxu0 0
        %1014 = vmatpush1.bf16.msra.mxu0 %v1008
        %1015 = vmatprep.subr.bf16.mxu0 0
        %1016 = vmatpush1.bf16.msra.mxu0 0
        %1017 = vmatprep.subr.bf16.mxu0 0
        %1018 = vmatpush1.bf16.msra.mxu0 0
        %1019 = vmatprep.subr.bf16.mxu0 0
        %1020 = vmatpush1.bf16.msra.mxu0 0
        %1021 = vmatprep.subr.bf16.mxu0 0
        %1022 = vmatpush1.bf16.msra.mxu0 0
        %1023 = vmatprep.subr.bf16.mxu0 0
        %1024 = vmatpush1.bf16.msra.mxu0 0
        %1025 = vmatprep.subr.bf16.mxu0 0
        %1026 = vmatpush1.bf16.msra.mxu0 0
        %1027 = vmatprep.subr.bf16.mxu0 0
        %1028 = vmatpush1.bf16.msra.mxu0 0
        %1029 = vmatprep.subr.bf16.mxu0 0
        %1030 = vmatpush1.bf16.msra.mxu0 0
        %1031 = vmatprep.subr.bf16.mxu0 0
        %1032 = vmatpush1.bf16.msra.mxu0 0
        %1033 = vmatprep.subr.bf16.mxu0 0
        %1034 = vmatpush1.bf16.msra.mxu0 0
        %1035 = vmatprep.subr.bf16.mxu0 0
        %1036 = vmatpush1.bf16.msra.mxu0 0
        %1037 = vmatprep.subr.bf16.mxu0 0
        %1038 = vmatpush1.bf16.msra.mxu0 0
        %1039 = vmatprep.subr.bf16.mxu0 0
        %1040 = vmatpush1.bf16.msra.mxu0 0
        %1041 = vmatprep.subr.bf16.mxu0 0
        %1042 = vmatpush1.bf16.msra.mxu0 0
        %1043 = vmatprep.subr.bf16.mxu0 0
        %1044 = vmatpush1.bf16.msra.mxu0 0
        %1045 = vmatprep.mubr.bf16.mxu0 0
        %1046 = vmatmul.mubr.bf16.gmra.mrb[0].mxu0 %v1011
        %v1047 = vpop.f32.mrb[0].mxu0
        %v1048 = vadd.f32 0.0, %v1047
        %v1049 = vpop.f32.mrb[0].mxu0
        %v1050 = vpop.f32.mrb[0].mxu0
        %v1051 = vpop.f32.mrb[0].mxu0
        %1052 = vdwg.mxu0
        %v1053 = vrcp.pop %v1004
        %v1054 = vmul.f32 %v1048, %v1053
        %1056 = vrot.lane.b32.xlu0 %v1054, 64
        %v1057 = vpop.permute.xlu0 %1056
        %v1059 = vsel %vm775, %v878, %v1057
        %v1060 = vpack.c.bf16 %v1059, %v1059
        %v1061 = vld [vmem:[#allocation11] sm:$0xf]
        %v1062 = vld [vmem:[#allocation11 + $0x4] sm:$0xf]
        %v1063 = vld [vmem:[#allocation11 + $0x8] sm:$0xf]
        %v1064 = vld [vmem:[#allocation11 + $0xc] sm:$0xf]
        %v1065 = vld [vmem:[#allocation11 + $0x10] sm:$0xf]
        %v1066 = vld [vmem:[#allocation11 + $0x14] sm:$0xf]
        %v1067 = vld [vmem:[#allocation11 + $0x18] sm:$0xf]
        %v1068 = vld [vmem:[#allocation11 + $0x1c] sm:$0xf]
        %v1069 = vld [vmem:[#allocation11 + $0x20] sm:$0xf]
        %v1070 = vld [vmem:[#allocation11 + $0x24] sm:$0xf]
        %v1071 = vld [vmem:[#allocation11 + $0x28] sm:$0xf]
        %v1072 = vld [vmem:[#allocation11 + $0x2c] sm:$0xf]
        %v1073 = vld [vmem:[#allocation11 + $0x30] sm:$0xf]
        %v1074 = vld [vmem:[#allocation11 + $0x34] sm:$0xf]
        %v1075 = vld [vmem:[#allocation11 + $0x38] sm:$0xf]
        %v1076 = vld [vmem:[#allocation11 + $0x3c] sm:$0xf]
        %v1077 = vld [vmem:[%s8] sm:$0x1]
        %v1079 = vlaneseq
        %v1080 = vshrl.u32 %v1079, 7
        %v1081 = vsub.s32 0, %v1080
        %v1082 = vrot.slane %v1077, %v1081
        %v1100 = vunpack.c.l.b16 %v1061
        %v1101 = vunpack.c.l.b16 %v1062
        %v1102 = vunpack.c.l.b16 %v1063
        %v1103 = vunpack.c.l.b16 %v1064
        %v1104 = vunpack.c.l.b16 %v1065
        %v1105 = vunpack.c.l.b16 %v1066
        %v1106 = vunpack.c.l.b16 %v1067
        %v1107 = vunpack.c.l.b16 %v1068
        %v1108 = vunpack.c.l.b16 %v1069
        %v1109 = vunpack.c.l.b16 %v1070
        %v1110 = vunpack.c.l.b16 %v1071
        %v1111 = vunpack.c.l.b16 %v1072
        %v1112 = vunpack.c.l.b16 %v1073
        %v1113 = vunpack.c.l.b16 %v1074
        %v1114 = vunpack.c.l.b16 %v1075
        %v1115 = vunpack.c.l.b16 %v1076
        %v1116 = vpack.c.b16 %v1101, %v1100
        %v1117 = vpack.c.b16 %v1103, %v1102
        %v1118 = vpack.c.b16 %v1105, %v1104
        %v1119 = vpack.c.b16 %v1107, %v1106
        %v1120 = vpack.c.b16 %v1109, %v1108
        %v1121 = vpack.c.b16 %v1111, %v1110
        %v1122 = vpack.c.b16 %v1113, %v1112
        %v1123 = vpack.c.b16 %v1115, %v1114
        %1132 = vmatprep.subr.bf16.mxu0 0
        %1133 = vmatpush1.bf16.msra.mxu0 %v1116
        %1134 = vmatprep.subr.bf16.mxu0 0
        %1135 = vmatpush1.bf16.msra.mxu0 %v1117
        %1136 = vmatprep.subr.bf16.mxu0 0
        %1137 = vmatpush1.bf16.msra.mxu0 %v1118
        %1138 = vmatprep.subr.bf16.mxu0 0
        %1139 = vmatpush1.bf16.msra.mxu0 %v1119
        %1140 = vmatprep.subr.bf16.mxu0 0
        %1141 = vmatpush1.bf16.msra.mxu0 %v1120
        %1142 = vmatprep.subr.bf16.mxu0 0
        %1143 = vmatpush1.bf16.msra.mxu0 %v1121
        %1144 = vmatprep.subr.bf16.mxu0 0
        %1145 = vmatpush1.bf16.msra.mxu0 %v1122
        %1146 = vmatprep.subr.bf16.mxu0 0
        %1147 = vmatpush1.bf16.msra.mxu0 %v1123
        %1148 = vmatprep.subr.bf16.mxu0 0
        %1149 = vmatpush1.bf16.msra.mxu0 0
        %1150 = vmatprep.subr.bf16.mxu0 0
        %1151 = vmatpush1.bf16.msra.mxu0 0
        %1152 = vmatprep.subr.bf16.mxu0 0
        %1153 = vmatpush1.bf16.msra.mxu0 0
        %1154 = vmatprep.subr.bf16.mxu0 0
        %1155 = vmatpush1.bf16.msra.mxu0 0
        %1156 = vmatprep.subr.bf16.mxu0 0
        %1157 = vmatpush1.bf16.msra.mxu0 0
        %1158 = vmatprep.subr.bf16.mxu0 0
        %1159 = vmatpush1.bf16.msra.mxu0 0
        %1160 = vmatprep.subr.bf16.mxu0 0
        %1161 = vmatpush1.bf16.msra.mxu0 0
        %1162 = vmatprep.subr.bf16.mxu0 0
        %1163 = vmatpush1.bf16.msra.mxu0 0
        %1164 = vmatprep.mubr.bf16.mxu0 0
        %1165 = vmatmul.mubr.bf16.gmra.mrb[0].mxu0 %v1060
        %v1166 = vpop.f32.mrb[0].mxu0
        %v1167 = vadd.f32 %v1082, %v1166
        %v1168 = vpop.f32.mrb[0].mxu0
        %v1169 = vpop.f32.mrb[0].mxu0
        %v1170 = vpop.f32.mrb[0].mxu0
        %1171 = vdwg.mxu0
        %1172 = vst [vmem:[%s435] sm:$0xff] %v1167
        %s1173 = sand.u32 %s245, 1
        %s1174 = scalar_lea.sflag [#allocation4], %s1173
        %s1175 = sand.u32 %s245, 1
        %s1176 = smul.addr %s1175, 8
        %s1177 = scalar_lea.vmem [#allocation13], %s1176
        // Predicated region
        $region81: #{tpu_custom_call.1} parent=55 // pred_check
          %p1178 = pneg %p255
        $region82: #{tpu_custom_call.1} parent=55 // pred_check_branch
          %1180 = sbr.rel (%p1178) target = $region84
        $region83: #{tpu_custom_call.1} parent=55 // pred_region
          %s1182 = ssub.s32 128, 128
          %1183 = vsyncadd %s1174, %s1182
          %s1184 = smul.addr %s33, 2
          %s1185 = sadd.s32 %s34, %s1184
          %s1186 = smul.addr %s1185, 128
          %s1187 = scalar_lea.hbm %s9, %s1186
          %s1189 = sshll.u32 %s1177, 4
          %s1190 = int_to_ptr.vmem [resolvable:$true] %s1189
          %1192 = dma.vmem_to_hbm [thread:$0]  %s1190, 128, %s1187, %s1174
        $region84: #{tpu_custom_call.1} parent=55 // pred_fallthru
          _
      $region56: #{tpu_custom_call.1} parent=5 // pred_fallthru
        _
      %p1193 = scmp.le.s32.totalorder 2, %s24
      // Predicated region
      $region85: #{tpu_custom_call.1} parent=5 // pred_check
        %p1194 = pneg %p1193
      $region86: #{tpu_custom_call.1} parent=5 // pred_check_branch
        %1196 = sbr.rel (%p1194) target = $region88
      $region87: #{tpu_custom_call.1} parent=5 // pred_region
        %s1197 = ssub.s32 %s24, 2
        // Predicated region
        $region89: #{tpu_custom_call.1} parent=87 // pred_check
          %p1198 = pneg %p261
        $region90: #{tpu_custom_call.1} parent=87 // pred_check_branch
          %1200 = sbr.rel (%p1198) target = $region92
        $region91: #{tpu_custom_call.1} parent=87 // pred_region
          %s1201 = sand.u32 %s246, 1
          %s1202 = scalar_lea.sflag [#allocation4], %s1201
          %s1203 = sand.u32 %s246, 1
          %s1204 = smul.addr %s1203, 8
          %s1205 = scalar_lea.vmem [#allocation13], %s1204
          %1206 = dma.done %s1202, 128
        $region92: #{tpu_custom_call.1} parent=87 // pred_fallthru
          _
      $region88: #{tpu_custom_call.1} parent=5 // pred_fallthru
        _
    $region6: #{tpu_custom_call.1} parent=1 // loop_footer
      %s28 = sadd.s32 1, %s24
    $region7: #{tpu_custom_call.1} parent=1 // loop_footer_branch
      %23 = sbr.rel target = $region3
    $region8: #{tpu_custom_call.1} parent=1 // loop_exit
      _
    %1207 = vsyncpa [#allocation3], 1
    %s1208 = scalar_lea.sflag [#allocation3], 1
    %1209 = vsyncpa %s1208, 1
    %1210 = vsyncpa [#allocation6], 1
    %1211 = vsyncpa [#allocation9], 1
    %1212 = vsyncpa [#allocation12], 1
    %1213 = vsyncpa [#allocation4], 1
    %s1214 = scalar_lea.sflag [#allocation4], 1
    %1215 = vsyncpa %s1214, 1

</llo_original>
